<compile_context>
chip_gen: v7x
topology: tpu7x:2x2x1
jax: 0.10.0
libtpu: 0.0.40
codegen_flags: <defaults>
</compile_context>

<pallas_src>
import functools

import jax
import jax.numpy as jnp
from jax.experimental import pallas as pl
from jax.experimental.pallas import tpu as pltpu


def _attention_kernel(hproj_ref, enc_ref, we_ref, vw_ref, keep_ref, o_ref,
                      *, matmul_dtype):
    # hproj_ref: (Bt, H)     f32          hidden @ W_hid^T + b (precomputed in wrapper)
    # enc_ref:   (Bt, S, De) f32          encoder outputs tile (cast to matmul_dtype here)
    # we_ref:    (De, H)     matmul_dtype attn weight slice acting on encoder_outputs (transposed)
    # vw_ref:    (1, H)      f32          v weight (no bias)
    # keep_ref:  (Bt, S)     f32          1.0 = keep, 0.0 = masked
    # o_ref:     (Bt, S)     f32          softmax attention weights over S (lane-dense)
    Bt, S, De = enc_ref.shape
    H = we_ref.shape[1]

    # One MXU matmul with M = Bt*S rows, f32 accumulate.  The (Bt, S) -> Bt*S
    # collapse is layout-preserving when S % 8 == 0 (f32 sublane count).
    enc2d = enc_ref[...].reshape(Bt * S, De).astype(matmul_dtype)
    e = jnp.dot(enc2d, we_ref[...], preferred_element_type=jnp.float32)   # (Bt*S, H)
    e = e.reshape(Bt, S, H) + hproj_ref[...][:, None, :]                  # + (Bt, 1, H)
    energy = jnp.tanh(e)                                                  # f32, EUP

    # attention = energy @ v^T, computed as a lane reduction so the result lands
    # lane-dense as (Bt, S) instead of a width-1 column.
    scores = jnp.sum(energy * vw_ref[...].reshape(1, 1, H), axis=-1)      # (Bt, S)
    # Exact masked_fill semantics.
    scores = jnp.where(keep_ref[...] != 0, scores, jnp.float32(-10000000000.0))

    # Softmax over the sequence axis (dim=1 in the PyTorch module).
    m = jnp.max(scores, axis=-1, keepdims=True)
    p = jnp.exp(scores - m)
    o_ref[...] = (p / jnp.sum(p, axis=-1, keepdims=True)).astype(o_ref.dtype)


def _num_tensorcores():
    """Best-effort TensorCore count (2 on v7x).  Falls back to 1."""
    try:
        info = pltpu.get_tpu_info()
        for attr in ("num_tensorcores", "tensorcores_per_chip", "num_cores",
                     "core_count", "tensorcore_count"):
            v = getattr(info, attr, None)
            if v:
                return int(v)
    except Exception:
        pass
    return 1


def _vmem_limit_bytes():
    """Scoped-VMEM limit: 3/4 of physical, capped at 96 MiB.

    v5e/v6e (128 MiB physical) -> 96 MiB; v7x (64 MiB physical) -> 48 MiB.
    Fallback assumes the smallest (v7x) physical VMEM.
    """
    try:
        cap = int(pltpu.get_tpu_info().vmem_capacity_bytes)
    except Exception:
        cap = 64 << 20
    return min(96 << 20, (cap * 3) // 4)


def _choose_batch_tile(B, S, De, per_buffer_budget_bytes, num_tensorcores=1):
    """Batch rows per grid step.

    Sized against the f32 encoder-outputs stream (4 B/elem).  Per-step VMEM
    footprint ~= 2x enc tile (double buffer) + ~2x enc-tile-equivalent of f32
    intermediates (e / energy, each (Bt*S, H) with De = 2H) + the bf16 copy,
    which is why the caller derives `per_buffer_budget_bytes` as roughly 1/5 of
    the scoped-VMEM limit.
    """
    row_bytes = S * De * 4                              # one batch row, f32
    bt = max(1, per_buffer_budget_bytes // row_bytes)
    bt = min(bt, B)
    if num_tensorcores >= 2 and B >= 16:
        # Keep >= 2 grid steps so the "parallel" batch axis shards across TCs.
        bt = min(bt, -(-B // num_tensorcores))
    # Sublane-align (round Bt up to a multiple of 8); a ragged cdiv grid handles
    # the tail.  If the tile covers the whole batch, use the full dim (which
    # also satisfies the (8,128) block rule regardless of alignment).
    bt = -(-bt // 8) * 8
    if bt >= B:
        return B
    return int(bt)


def attention_forward(hidden, encoder_outputs, attn_w, attn_b, v_w, mask=None,
                      matmul_dtype=jnp.bfloat16):
    """Pallas implementation of Attention.forward.

    hidden:          (B, H)      float32
    encoder_outputs: (B, S, 2H)  float32
    attn_w:          (H, 3H)     nn.Linear(3H, H).weight
    attn_b:          (H,)        nn.Linear(3H, H).bias
    v_w:             (1, H)      nn.Linear(H, 1, bias=False).weight
    mask:            (B, S) or None
    returns:         (B, S)      softmax attention weights

    Note: the default matmul_dtype=bfloat16 is an intentional accuracy trade-off
    for the big matmul (atol ~2e-2 vs a pure-f32 reference).  Pass
    matmul_dtype=jnp.float32 for bit-tight agreement.
    """
    B, S, De = encoder_outputs.shape
    H = hidden.shape[1]
    assert attn_w.shape == (H, H + De)

    # Split the concat-Linear.  The hidden half is a tiny matmul; precompute it
    # (plus bias) so the kernel never runs a degenerate M=1 MXU op.
    wh = attn_w[:, :H]                                       # (H, H)
    we = jnp.transpose(attn_w[:, H:]).astype(matmul_dtype)   # (De, H), tiny one-time cast
    hproj = (hidden @ wh.T + attn_b).astype(jnp.float32)     # (B, H)
    vw = v_w.reshape(1, H).astype(jnp.float32)

    # Keep-mask (1.0 keep, 0.0 masked); the kernel applies exact masked_fill.
    if mask is None:
        keep = jnp.ones((B, S), jnp.float32)
    else:
        keep = (mask != 0).astype(jnp.float32)

    # Stream encoder_outputs as f32 (single HBM read); cast on-chip in the kernel.
    enc = encoder_outputs.astype(jnp.float32)

    vmem_limit = int(_vmem_limit_bytes())
    per_buffer_budget = max(1 << 20, (vmem_limit - (4 << 20)) // 5)
    Bt = _choose_batch_tile(B, S, De, per_buffer_budget, _num_tensorcores())
    grid = (pl.cdiv(B, Bt),)

    kernel = functools.partial(_attention_kernel, matmul_dtype=matmul_dtype)

    out = pl.pallas_call(
        kernel,
        out_shape=jax.ShapeDtypeStruct((B, S), jnp.float32),
        grid=grid,
        in_specs=[
            pl.BlockSpec((Bt, H), lambda i: (i, 0)),        # hproj (2-D, no size-1 dim)
            pl.BlockSpec((Bt, S, De), lambda i: (i, 0, 0)),  # encoder outputs (f32 stream)
            pl.BlockSpec((De, H), lambda i: (0, 0)),         # W_enc^T (resident)
            pl.BlockSpec((1, H), lambda i: (0, 0)),          # v weight (resident)
            pl.BlockSpec((Bt, S), lambda i: (i, 0)),         # keep mask (lane-dense)
        ],
        out_specs=pl.BlockSpec((Bt, S), lambda i: (i, 0)),   # lane-dense output
        compiler_params=pltpu.CompilerParams(
            dimension_semantics=("parallel",),
            vmem_limit_bytes=vmem_limit,
        ),
    )(hproj, enc, we, vw, keep)
    return out


def attention_reference(hidden, encoder_outputs, attn_w, attn_b, v_w, mask=None):
    """Pure-JAX transcription of the PyTorch forward, for verification."""
    B, S, _ = encoder_outputs.shape
    h = jnp.repeat(hidden[:, None, :], S, axis=1)
    energy = jnp.tanh(jnp.concatenate([h, encoder_outputs], axis=2) @ attn_w.T + attn_b)
    attention = (energy @ v_w.T)[..., 0]
    if mask is not None:
        attention = jnp.where(mask == 0, -10000000000.0, attention)
    return jax.nn.softmax(attention, axis=1)


if __name__ == "__main__":
    B, S, H = 2, 8, 32          # batch, src_len, hidden_size
    De = 2 * H                  # encoder output feature dim (so cat dim == 3H)

    key = jax.random.PRNGKey(0)
    k_h, k_e, k_w, k_b, k_v = jax.random.split(key, 5)

    # Deterministic parameter init (PyTorch-style uniform +/- 1/sqrt(fan_in)).
    bound_attn = 1.0 / jnp.sqrt(3.0 * H)
    bound_v = 1.0 / jnp.sqrt(float(H))
    attn_w = jax.random.uniform(k_w, (H, 3 * H), jnp.float32, -bound_attn, bound_attn)
    attn_b = jax.random.uniform(k_b, (H,), jnp.float32, -bound_attn, bound_attn)
    v_w = jax.random.uniform(k_v, (1, H), jnp.float32, -bound_v, bound_v)

    hidden = jax.random.normal(k_h, (B, H), jnp.float32)
    encoder_outputs = jax.random.normal(k_e, (B, S, De), jnp.float32)
    # mask: second sequence is padded after position 5
    mask = jnp.array([[1] * S, [1] * 5 + [0] * (S - 5)], dtype=jnp.int32)

    ref = attention_reference(hidden, encoder_outputs, attn_w, attn_b, v_w, mask)

    # Default path (bf16 MXU): loose tolerance vs the f32 reference.
    out = attention_forward(hidden, encoder_outputs, attn_w, attn_b, v_w, mask)
    out = jax.block_until_ready(out)
    assert out.shape == (B, S)
    assert jnp.allclose(out, ref, atol=2e-2, rtol=0.0), (out, ref)
    assert jnp.allclose(jnp.sum(out, axis=1), 1.0, atol=1e-5)

    # f32 MXU path: should match the reference tightly (same math, different tiling).
    out_f32 = attention_forward(hidden, encoder_outputs, attn_w, attn_b, v_w, mask,
                                matmul_dtype=jnp.float32)
    out_f32 = jax.block_until_ready(out_f32)
    assert jnp.allclose(out_f32, ref, atol=1e-5, rtol=1e-5), (out_f32, ref)

    # No-mask path (mask=None branch of the module).
    out_nm = attention_forward(hidden, encoder_outputs, attn_w, attn_b, v_w, None,
                               matmul_dtype=jnp.float32)
    ref_nm = attention_reference(hidden, encoder_outputs, attn_w, attn_b, v_w, None)
    out_nm = jax.block_until_ready(out_nm)
    assert jnp.allclose(out_nm, ref_nm, atol=1e-5, rtol=1e-5), (out_nm, ref_nm)

    print("KERNEL_OK")
</pallas_src>

<mosaic_0001>
module attributes {stable_mosaic.version = 11 : i64} {
  func.func @_attention_kernel(%arg0: i32, %arg1: memref<2x32xf32, #tpu.memory_space<vmem>>, %arg2: memref<2x8x64xf32, #tpu.memory_space<vmem>>, %arg3: memref<64x32xbf16, #tpu.memory_space<vmem>>, %arg4: memref<1x32xf32, #tpu.memory_space<vmem>>, %arg5: memref<2x8xf32, #tpu.memory_space<vmem>>, %arg6: memref<2x8xf32, #tpu.memory_space<vmem>>) attributes {dimension_semantics = [#tpu.dimension_semantics<parallel>], iteration_bounds = array<i64: 1>, scalar_prefetch = 0 : i64, scratch_operands = 0 : i64, tpu.core_type = #tpu.core_type<tc>, window_params = [{transform_indices = @transform_0, window_bounds = array<i64: 2, 32>}, {transform_indices = @transform_1, window_bounds = array<i64: 2, 8, 64>}, {pipeline_mode = #tpu.pipeline_mode<synchronous>, transform_indices = @transform_2, window_bounds = array<i64: 64, 32>}, {pipeline_mode = #tpu.pipeline_mode<synchronous>, transform_indices = @transform_3, window_bounds = array<i64: 1, 32>}, {transform_indices = @transform_4, window_bounds = array<i64: 2, 8>}, {transform_indices = @transform_5, window_bounds = array<i64: 2, 8>}]} {
    %c0 = arith.constant 0 : index
    %c0_0 = arith.constant 0 : index
    %c0_1 = arith.constant 0 : index
    %0 = vector.load %arg2[%c0, %c0_0, %c0_1] : memref<2x8x64xf32, #tpu.memory_space<vmem>>, vector<2x8x64xf32>
    %1 = vector.shape_cast %0 : vector<2x8x64xf32> to vector<16x64xf32>
    %2 = arith.truncf %1 : vector<16x64xf32> to vector<16x64xbf16>
    %c0_2 = arith.constant 0 : index
    %c0_3 = arith.constant 0 : index
    %3 = vector.load %arg3[%c0_2, %c0_3] : memref<64x32xbf16, #tpu.memory_space<vmem>>, vector<64x32xbf16>
    %cst = arith.constant dense<0.000000e+00> : vector<16x32xf32>
    %4 = tpu.matmul %2, %3, %cst {dimension_numbers = #tpu.dot_dimension_numbers<[1], [0], [0], [1], [0, 0, 1, 1], [], []>} : vector<16x64xbf16>, vector<64x32xbf16>, vector<16x32xf32> -> vector<16x32xf32>
    %5 = vector.shape_cast %4 : vector<16x32xf32> to vector<2x8x32xf32>
    %c0_4 = arith.constant 0 : index
    %c0_5 = arith.constant 0 : index
    %6 = vector.load %arg1[%c0_4, %c0_5] : memref<2x32xf32, #tpu.memory_space<vmem>>, vector<2x32xf32>
    %7 = vector.shape_cast %6 : vector<2x32xf32> to vector<2x1x32xf32>
    %8 = vector.broadcast %7 : vector<2x1x32xf32> to vector<2x8x32xf32>
    %9 = arith.addf %5, %8 : vector<2x8x32xf32>
    %10 = math.tanh %9 : vector<2x8x32xf32>
    %c0_6 = arith.constant 0 : index
    %c0_7 = arith.constant 0 : index
    %11 = vector.load %arg4[%c0_6, %c0_7] : memref<1x32xf32, #tpu.memory_space<vmem>>, vector<1x32xf32>
    %12 = vector.shape_cast %11 : vector<1x32xf32> to vector<1x1x32xf32>
    %13 = vector.broadcast %12 : vector<1x1x32xf32> to vector<2x8x32xf32>
    %14 = arith.mulf %10, %13 : vector<2x8x32xf32>
    %cst_8 = arith.constant dense<0.000000e+00> : vector<2x8xf32>
    %15 = vector.multi_reduction <add>, %14, %cst_8 [2] : vector<2x8x32xf32> to vector<2x8xf32>
    %c0_9 = arith.constant 0 : index
    %c0_10 = arith.constant 0 : index
    %16 = vector.load %arg5[%c0_9, %c0_10] : memref<2x8xf32, #tpu.memory_space<vmem>>, vector<2x8xf32>
    %cst_11 = arith.constant 0.000000e+00 : f32
    %17 = vector.broadcast %cst_11 : f32 to vector<2x8xf32>
    %18 = arith.cmpf one, %16, %17 : vector<2x8xf32>
    %cst_12 = arith.constant -1.000000e+10 : f32
    %19 = vector.broadcast %cst_12 : f32 to vector<2x8xf32>
    %20 = arith.select %18, %15, %19 : vector<2x8xi1>, vector<2x8xf32>
    %cst_13 = arith.constant dense<0xFF800000> : vector<2xf32>
    %21 = vector.multi_reduction <maximumf>, %20, %cst_13 [1] : vector<2x8xf32> to vector<2xf32>
    %22 = vector.shape_cast %21 : vector<2xf32> to vector<2x1xf32>
    %23 = vector.broadcast %22 : vector<2x1xf32> to vector<2x8xf32>
    %24 = arith.subf %20, %23 : vector<2x8xf32>
    %25 = math.exp %24 : vector<2x8xf32>
    %cst_14 = arith.constant dense<0.000000e+00> : vector<2xf32>
    %26 = vector.multi_reduction <add>, %25, %cst_14 [1] : vector<2x8xf32> to vector<2xf32>
    %27 = vector.shape_cast %26 : vector<2xf32> to vector<2x1xf32>
    %28 = vector.broadcast %27 : vector<2x1xf32> to vector<2x8xf32>
    %29 = arith.divf %25, %28 : vector<2x8xf32>
    %c0_15 = arith.constant 0 : index
    %c0_16 = arith.constant 0 : index
    %30 = vector.load %arg6[%c0_15, %c0_16] : memref<2x8xf32, #tpu.memory_space<vmem>>, vector<2x8xf32>
    tpu.vector_store %arg6[%c0_15, %c0_16], %29 {strides = array<i32>} : memref<2x8xf32, #tpu.memory_space<vmem>>, vector<2x8xf32>,
    return
  }
  func.func @transform_0(%arg0: i32) -> (i32, i32) {
    %c0_i32 = arith.constant 0 : i32
    %c0_i32_0 = arith.constant 0 : i32
    return %arg0, %c0_i32 : i32, i32
  }
  func.func @transform_1(%arg0: i32) -> (i32, i32, i32) {
    %c0_i32 = arith.constant 0 : i32
    %c0_i32_0 = arith.constant 0 : i32
    %c0_i32_1 = arith.constant 0 : i32
    return %arg0, %c0_i32, %c0_i32_0 : i32, i32, i32
  }
  func.func @transform_2(%arg0: i32) -> (i32, i32) {
    %c0_i32 = arith.constant 0 : i32
    %c0_i32_0 = arith.constant 0 : i32
    %c0_i32_1 = arith.constant 0 : i32
    return %c0_i32, %c0_i32_0 : i32, i32
  }
  func.func @transform_3(%arg0: i32) -> (i32, i32) {
    %c0_i32 = arith.constant 0 : i32
    %c0_i32_0 = arith.constant 0 : i32
    %c0_i32_1 = arith.constant 0 : i32
    return %c0_i32, %c0_i32_0 : i32, i32
  }
  func.func @transform_4(%arg0: i32) -> (i32, i32) {
    %c0_i32 = arith.constant 0 : i32
    %c0_i32_0 = arith.constant 0 : i32
    return %arg0, %c0_i32 : i32, i32
  }
  func.func @transform_5(%arg0: i32) -> (i32, i32) {
    %c0_i32 = arith.constant 0 : i32
    %c0_i32_0 = arith.constant 0 : i32
    return %arg0, %c0_i32 : i32, i32
  }
}

</mosaic_0001>

<llo_original>
// kernel: tpu_custom_call.1
$region0: #{tpu_custom_call.1}
  #allocation0 [shape = 'u32[]', space=smem, size = 0x4, offset = 0x4, fixed_abs, tag = 'smem constant byte address 0x4 - core index']
  #allocation1 [shape = 'u32[144,128]{1,0:T(1,128)}', space=vmem, size = 0x12000, scoped, tag = 'internal scratch']
  %s0 = inlined_call_operand.vmem [shape: f32[2,32], index: 0, kind: input, shape index: {}]
  %s1 = inlined_call_operand.vmem [shape: f32[2,8,64], index: 1, kind: input, shape index: {}]
  %s2 = inlined_call_operand.vmem [shape: bf16[64,32], index: 2, kind: input, shape index: {}]
  %s3 = inlined_call_operand.vmem [shape: f32[1,32], index: 3, kind: input, shape index: {}]
  %s4 = inlined_call_operand.vmem [shape: f32[2,8], index: 4, kind: input, shape index: {}]
  %s5 = inlined_call_operand.hbm [shape: f32[2,8], index: 5, kind: output, shape index: {}]
  %s6 = sld [smem:[#allocation0]]
  $region30: #{tpu_custom_call.1} parent=0
    _
  %s8 = ssub.s32 1, %s6
  %s9 = scalar_select 0, %s8, %s6
  $region1: #{tpu_custom_call.1} parent=0
    #allocation2 [shape = 'u8[1024]{0}', space=vmem, size = 0x400, scoped, tag = 'output window, operand 0, single buffered']
    #allocation3 [shape = 's32[1]{0}', space=sflag, size = 0x4, scoped, tag = 'scoped memory for tpu_custom_call.1']
    %10 = vsyncpa [#allocation3], 0
    // Predicated region
    $region2: #{tpu_custom_call.1} parent=1 // pred_check
      _
    $region3: #{tpu_custom_call.1} parent=1 // pred_check_branch
      %12 = sbr.rel (0) target = $region5
    $region4: #{tpu_custom_call.1} parent=1 // pred_region
      _
    $region5: #{tpu_custom_call.1} parent=1 // pred_fallthru
      _
    // Predicated region
    $region6: #{tpu_custom_call.1} parent=1 // pred_check
      _
    $region7: #{tpu_custom_call.1} parent=1 // pred_check_branch
      %14 = sbr.rel (0) target = $region9
    $region8: #{tpu_custom_call.1} parent=1 // pred_region
      _
    $region9: #{tpu_custom_call.1} parent=1 // pred_fallthru
      _
    // Predicated region
    $region10: #{tpu_custom_call.1} parent=1 // pred_check
      _
    $region11: #{tpu_custom_call.1} parent=1 // pred_check_branch
      %16 = sbr.rel (0) target = $region13
    $region12: #{tpu_custom_call.1} parent=1 // pred_region
      _
    $region13: #{tpu_custom_call.1} parent=1 // pred_fallthru
      _
    // Predicated region
    $region14: #{tpu_custom_call.1} parent=1 // pred_check
      _
    $region15: #{tpu_custom_call.1} parent=1 // pred_check_branch
      %18 = sbr.rel (0) target = $region17
    $region16: #{tpu_custom_call.1} parent=1 // pred_region
      _
    $region17: #{tpu_custom_call.1} parent=1 // pred_fallthru
      _
    // Predicated region
    $region18: #{tpu_custom_call.1} parent=1 // pred_check
      _
    $region19: #{tpu_custom_call.1} parent=1 // pred_check_branch
      %20 = sbr.rel (0) target = $region21
    $region20: #{tpu_custom_call.1} parent=1 // pred_region
      _
    $region21: #{tpu_custom_call.1} parent=1 // pred_fallthru
      _
    %v22 = vld [vmem:[%s1] sm:$0xff]
    %v23 = vld [vmem:[%s1 + $0x8] sm:$0xff]
    %v24 = vpack.c.bf16 %v23, %v22
    %v25 = vld [vmem:[%s2] sm:$0xf]
    %v26 = vld [vmem:[%s2 + $0x4] sm:$0xf]
    %v27 = vld [vmem:[%s2 + $0x8] sm:$0xf]
    %v28 = vld [vmem:[%s2 + $0xc] sm:$0xf]
    %v29 = vld [vmem:[%s2 + $0x10] sm:$0xf]
    %v30 = vld [vmem:[%s2 + $0x14] sm:$0xf]
    %v31 = vld [vmem:[%s2 + $0x18] sm:$0xf]
    %v32 = vld [vmem:[%s2 + $0x1c] sm:$0xf]
    %v41 = vunpack.c.l.b16 %v25
    %v42 = vunpack.c.l.b16 %v26
    %v43 = vunpack.c.l.b16 %v27
    %v44 = vunpack.c.l.b16 %v28
    %v45 = vunpack.c.l.b16 %v29
    %v46 = vunpack.c.l.b16 %v30
    %v47 = vunpack.c.l.b16 %v31
    %v48 = vunpack.c.l.b16 %v32
    %v49 = vpack.c.b16 %v42, %v41
    %v50 = vpack.c.b16 %v44, %v43
    %v51 = vpack.c.b16 %v46, %v45
    %v52 = vpack.c.b16 %v48, %v47
    %vm57 = vcmask 523264
    %v59 = vsel %vm57, %v24, 0
    %61 = vmatprep.subr.bf16.mxu0 0
    %62 = vmatpush1.bf16.msra.mxu0 %v49
    %63 = vmatprep.subr.bf16.mxu0 0
    %64 = vmatpush1.bf16.msra.mxu0 %v50
    %65 = vmatprep.subr.bf16.mxu0 0
    %66 = vmatpush1.bf16.msra.mxu0 %v51
    %67 = vmatprep.subr.bf16.mxu0 0
    %68 = vmatpush1.bf16.msra.mxu0 %v52
    %69 = vmatprep.subr.bf16.mxu0 0
    %70 = vmatpush1.bf16.msra.mxu0 0
    %71 = vmatprep.subr.bf16.mxu0 0
    %72 = vmatpush1.bf16.msra.mxu0 0
    %73 = vmatprep.subr.bf16.mxu0 0
    %74 = vmatpush1.bf16.msra.mxu0 0
    %75 = vmatprep.subr.bf16.mxu0 0
    %76 = vmatpush1.bf16.msra.mxu0 0
    %77 = vmatprep.subr.bf16.mxu0 0
    %78 = vmatpush1.bf16.msra.mxu0 0
    %79 = vmatprep.subr.bf16.mxu0 0
    %80 = vmatpush1.bf16.msra.mxu0 0
    %81 = vmatprep.subr.bf16.mxu0 0
    %82 = vmatpush1.bf16.msra.mxu0 0
    %83 = vmatprep.subr.bf16.mxu0 0
    %84 = vmatpush1.bf16.msra.mxu0 0
    %85 = vmatprep.subr.bf16.mxu0 0
    %86 = vmatpush1.bf16.msra.mxu0 0
    %87 = vmatprep.subr.bf16.mxu0 0
    %88 = vmatpush1.bf16.msra.mxu0 0
    %89 = vmatprep.subr.bf16.mxu0 0
    %90 = vmatpush1.bf16.msra.mxu0 0
    %91 = vmatprep.subr.bf16.mxu0 0
    %92 = vmatpush1.bf16.msra.mxu0 0
    %93 = vmatprep.mubr.bf16.mxu0 0
    %94 = vmatmul.mubr.bf16.gmra.mrb[0].mxu0 %v59
    %v95 = vpop.f32.mrb[0].mxu0
    %v96 = vadd.f32 0.0, %v95
    %v97 = vpop.f32.mrb[0].mxu0
    %v98 = vpop.f32.mrb[0].mxu0
    %v99 = vadd.f32 0.0, %v98
    %v100 = vpop.f32.mrb[0].mxu0
    %101 = vdwg.mxu0
    %v102 = vld [vmem:[%s0] sm:$0x3]
    %v105 = vunpack.c.l.s4 1966171168
    %v106 = vunpack.c.0.s8 %v105
    %v107 = vlaneseq
    %v108 = vshrl.u32 %v107, 7
    %v109 = vsub.s32 %v106, %v108
    %v110 = vrot.slane %v102, %v109
    %v111 = vcombine.high %v110, %v110
    %v113 = vunpack.c.l.s4 1966171168
    %v114 = vunpack.c.0.s8 %v113
    %v115 = vlaneseq
    %v116 = vshrl.u32 %v115, 7
    %v117 = vsub.s32 %v114, %v116
    %v118 = vrot.slane %v110, %v117
    %v120 = vunpack.c.l.s4 1966171168
    %v121 = vunpack.c.0.s8 %v120
    %v122 = vlaneseq
    %v123 = vshrl.u32 %v122, 7
    %v124 = vsub.s32 %v121, %v123
    %v125 = vrot.slane %v111, %v124
    %v126 = vlaneseq
    %v127 = vshrl.u32 %v126, 7
    %v128 = vsub.s32 0, %v127
    %v129 = vrot.slane %v118, %v128
    %v130 = vlaneseq
    %v131 = vshrl.u32 %v130, 7
    %v132 = vsub.s32 0, %v131
    %v133 = vrot.slane %v125, %v132
    %v136 = vadd.f32 %v96, %v129
    %v137 = vadd.f32 %v99, %v133
    %v138 = vtanh.pop %v136
    %v139 = vtanh.pop %v137
    %v140 = vld [vmem:[%s3] sm:$0x1]
    %v142 = vlaneseq
    %v143 = vshrl.u32 %v142, 7
    %v144 = vsub.s32 0, %v143
    %v145 = vrot.slane %v140, %v144
    %v147 = vmul.f32 %v138, %v145
    %v148 = vmul.f32 %v139, %v145
    %vm149 = vcmask 261120
    %v150 = vsel %vm149, %v147, 0.0
    %151 = vadd.xlane.f32.xlu0 %v150
    %v152 = vpop.xlane.xlu0 %151
    %v153 = vsel %vm149, %v148, 0.0
    %154 = vadd.xlane.f32.xlu0 %v153
    %v155 = vpop.xlane.xlu0 %154
    %v156 = vld [vmem:[%s4] sm:$0x3]
    %vm157 = vcmp.ne.f32.partialorder %v156, 0.0
    %v160 = vlaneseq
    %v161 = vand.u32 %v160, 127
    %v162 = vlaneseq
    %v163 = vshrl.u32 %v162, 7
    %v164 = vsub.s32 %v161, %v163
    %v165 = vrot.slane %v152, %v164
    %v166 = vlaneseq
    %v167 = vshrl.u32 %v166, 7
    %v168 = vsub.s32 %v161, %v167
    %v169 = vrot.slane %v155, %v168
    %vm170 = vcmask 1041409
    %v171 = vsel %vm170, %v169, %v165
    %v173 = vsel %vm157, %v171, -1e+10
    %vm174 = vcmask 58368
    %v175 = vsel %vm174, %v173, -inf
    %176 = vmax.xlane.f32.xlu0 %v175
    %v177 = vpop.xlane.xlu0 %176
    %v178 = vsub.f32 %v173, %v177
    %v179 = vmul.f32 %v178, 1.442695
    %v180 = vpow.pop %v179
    %v181 = vsel %vm174, %v180, 0.0
    %182 = vadd.xlane.f32.xlu0 %v181
    %v183 = vpop.xlane.xlu0 %182
    %v184 = vrcp.pop %v183
    %v185 = vmul.f32 %v180, %v184
    %186 = vst.msk [vmem:[#allocation2] sm:$0x3] %vm174, %v185
    // Predicated region
    $region22: #{tpu_custom_call.1} parent=1 // pred_check
      _
    $region23: #{tpu_custom_call.1} parent=1 // pred_check_branch
      %188 = sbr.rel (0) target = $region25
    $region24: #{tpu_custom_call.1} parent=1 // pred_region
      %s190 = ssub.s32 32, 32
      %191 = vsyncadd [#allocation3], %s190
      %s193 = sshll.u32 [#allocation2], 4
      %s194 = int_to_ptr.vmem [resolvable:$true] %s193
      %196 = dma.vmem_to_hbm [thread:$0]  %s194, 32, %s5, [#allocation3]
    $region25: #{tpu_custom_call.1} parent=1 // pred_fallthru
      _
    // Predicated region
    $region26: #{tpu_custom_call.1} parent=1 // pred_check
      _
    $region27: #{tpu_custom_call.1} parent=1 // pred_check_branch
      %198 = sbr.rel (0) target = $region29
    $region28: #{tpu_custom_call.1} parent=1 // pred_region
      %199 = dma.done [#allocation3], 32
    $region29: #{tpu_custom_call.1} parent=1 // pred_fallthru
      _
    %200 = vsyncpa [#allocation3], 1

</llo_original>
